<compile_context>
chip_gen: v7x
topology: tpu7x:2x2x1
jax: 0.10.0
libtpu: 0.0.40
codegen_flags: <defaults>
</compile_context>

<pallas_src>
import functools

import jax
import jax.numpy as jnp
from jax.experimental import pallas as pl
from jax.experimental.pallas import tpu as pltpu

NUM_CLASSES = 5            # torch.zeros(5) hard-codes 5 classes
MAX_TILE_N = 131072        # lane columns per grid step (~16 MiB double-buffered VMEM)
_AUTO_SPLIT_MIN_COLS = 2 * 65536   # auto-enable the 2-way core split only for big N


def _round_up(x, m):
    return ((x + m - 1) // m) * m


def _cdiv(a, b):
    return (a + b - 1) // b


def _stats_kernel(logits_ref, target_ref, cnt_ref, nll_ref, *,
                  n_rows, tiles_per_split, tile_n):
    """One grid step over a [C, tile_n] slab of (transposed) logits.

    logits_ref : [C, tile_n] f32   (classes on sublanes, rows on lanes)
    target_ref : [1, tile_n] i32
    cnt_ref    : [C, 1] f32 per-split output block, accumulates class counts
    nll_ref    : [C, 1] f32 per-split output block, accumulates per-class NLL sums
    """
    t_idx = pl.program_id(1)

    @pl.when(t_idx == 0)
    def _init():
        cnt_ref[...] = jnp.zeros_like(cnt_ref)
        nll_ref[...] = jnp.zeros_like(nll_ref)

    # Logical (un-clamped) column offset of this tile; OOB / padded columns get an
    # all-false mask so they contribute nothing to counts or NLL sums.
    col0 = (pl.program_id(0) * tiles_per_split + t_idx) * tile_n
    lane = jax.lax.broadcasted_iota(jnp.int32, (1, tile_n), 1)
    valid = lane < (n_rows - col0)                                   # [1, T] bool

    # Mask x itself (not just onehot) so ragged-block garbage (possibly NaN/Inf in
    # stale VMEM) can never poison the accumulators.
    x = jnp.where(valid, logits_ref[...], 0.0)                       # [C, T] f32
    tgt = target_ref[...]                                            # [1, T] i32
    cls = jax.lax.broadcasted_iota(jnp.int32, (NUM_CLASSES, tile_n), 0)
    onehot_b = jnp.logical_and(cls == tgt, valid)                    # [C, T] bool
    onehot_f = onehot_b.astype(jnp.float32)

    # Per-column log-sum-exp: only two cross-sublane (XLU) reductions per vreg.
    m = jnp.max(x, axis=0, keepdims=True)                            # [1, T]
    lse = jnp.log(jnp.sum(jnp.exp(x - m), axis=0, keepdims=True))    # [1, T]
    nll_all = (m + lse) - x                                          # [C, T] = -log p_c

    # Lane reductions -> fixed-width (C, 1) partials accumulated into the output blocks.
    cnt_ref[...] += jnp.sum(onehot_f, axis=1, keepdims=True)
    nll_ref[...] += jnp.sum(jnp.where(onehot_b, nll_all, 0.0), axis=1, keepdims=True)


def _class_stats_pallas(logits_t, target_2d, n_rows, *, tile_n, num_splits):
    """Returns (counts[C], nll_sum[C]) over all valid rows."""
    _, n_cols = logits_t.shape
    tiles_total = _cdiv(n_cols, tile_n)
    tiles_per_split = _cdiv(tiles_total, num_splits)

    def col_block(s, t):
        # Clamp so fully out-of-range trailing tiles read a valid block; the in-kernel
        # mask (based on the un-clamped logical offset) zeroes their contribution.
        return jnp.minimum(s * tiles_per_split + t, tiles_total - 1)

    kernel = functools.partial(_stats_kernel, n_rows=n_rows,
                               tiles_per_split=tiles_per_split, tile_n=tile_n)

    cnt, nll = pl.pallas_call(
        kernel,
        out_shape=(
            jax.ShapeDtypeStruct((num_splits, NUM_CLASSES, 1), jnp.float32),
            jax.ShapeDtypeStruct((num_splits, NUM_CLASSES, 1), jnp.float32),
        ),
        grid_spec=pltpu.PrefetchScalarGridSpec(
            num_scalar_prefetch=0,
            grid=(num_splits, tiles_per_split),
            in_specs=[
                pl.BlockSpec((NUM_CLASSES, tile_n), lambda s, t: (0, col_block(s, t))),
                pl.BlockSpec((1, tile_n), lambda s, t: (0, col_block(s, t))),
            ],
            out_specs=[
                pl.BlockSpec((None, NUM_CLASSES, 1), lambda s, t: (s, 0, 0)),
                pl.BlockSpec((None, NUM_CLASSES, 1), lambda s, t: (s, 0, 0)),
            ],
        ),
        compiler_params=pltpu.CompilerParams(
            # Leading axis splits N across TensorCores on v7x; runs sequentially on
            # single-core chips.  The tile axis is a reduction -> "arbitrary".
            dimension_semantics=("parallel", "arbitrary"),
            vmem_limit_bytes=32 * 1024 * 1024,
        ),
    )(logits_t, target_2d)

    counts = jnp.sum(cnt[:, :, 0], axis=0)     # combine per-split partials
    nll_sum = jnp.sum(nll[:, :, 0], axis=0)
    return counts, nll_sum


def _reference_loss(logits, target, beta):
    """Pure-JAX reference reproducing the PyTorch forward (also the small-N path)."""
    logits = logits.astype(jnp.float32)
    target = target.astype(jnp.int32)
    counts = jnp.zeros((NUM_CLASSES,), jnp.float32).at[target].add(1.0)
    effective_num = 1.0 - jnp.power(counts, jnp.float32(beta))
    alpha = (1.0 - beta) / effective_num
    alpha = alpha / jnp.sum(alpha) * 5.0
    logp = jax.nn.log_softmax(logits, axis=-1)
    nll = -jnp.take_along_axis(logp, target[:, None], axis=-1)[:, 0]
    w = alpha[target]
    valid = (target != 0).astype(jnp.float32)
    return jnp.sum(valid * w * nll) / jnp.sum(valid * w)


class ClassBalancedFocalLoss:
    """JAX/Pallas port of the PyTorch ClassBalancedFocalLoss module.

    Note: alpha is +-inf/NaN when some class has exactly one sample (effective_num=0)
    — this faithfully reproduces the PyTorch module.  Counts are accumulated in f32,
    so histogram exactness degrades beyond ~16.7M rows (matches float behavior).
    """

    def __init__(self, beta, gamma, *, tile_n=None, num_splits=None,
                 min_pallas_rows=1024):
        self.beta = float(beta)
        self.gamma = float(gamma)          # unused in forward(), same as PyTorch module
        self.tile_n = tile_n               # override lane-tile width (rounded to 128)
        self.num_splits = num_splits       # None = auto (2 only for large N, for v7x)
        self.min_pallas_rows = min_pallas_rows

    def __call__(self, logits, target):
        n, c = logits.shape
        assert c == NUM_CLASSES
        logits = logits.astype(jnp.float32)
        target = target.reshape(n).astype(jnp.int32)

        # Tiny problems: kernel launch + DMA setup dominates; let XLA fuse the math.
        if n < self.min_pallas_rows:
            return _reference_loss(logits, target, self.beta)

        n_128 = _round_up(n, 128)

        num_splits = self.num_splits
        if num_splits is None:
            num_splits = 2 if n_128 >= _AUTO_SPLIT_MIN_COLS else 1
        num_splits = max(1, int(num_splits))

        if self.tile_n is not None:
            tile_n = _round_up(int(self.tile_n), 128)
        else:
            tile_n = min(_round_up(_cdiv(n_128, num_splits), 128), MAX_TILE_N)

        # Lane-dense layout: classes on sublanes, rows on lanes.  Pad N only to a
        # multiple of 128 (ragged tile tail is masked in-kernel).
        # TODO(synk): remove this transpose copy by producing [C, N] logits upstream.
        logits_t = jnp.transpose(logits)                               # [5, N]
        if n_128 != n:
            logits_t = jnp.pad(logits_t, ((0, 0), (0, n_128 - n)))
            target = jnp.pad(target, (0, n_128 - n))                   # value irrelevant (masked)
        target_2d = target.reshape(1, n_128)

        counts, nll_sum = _class_stats_pallas(
            logits_t, target_2d, n, tile_n=tile_n, num_splits=num_splits)

        # Finalize (5 scalars, plain JAX): class-balanced alpha + weighted-mean CE
        # with ignore_index=0.
        beta = jnp.float32(self.beta)
        effective_num = 1.0 - jnp.power(counts, beta)
        alpha = (1.0 - beta) / effective_num
        alpha = alpha / jnp.sum(alpha) * 5.0
        keep = jnp.arange(NUM_CLASSES) != 0            # ignore_index = 0
        num = jnp.sum(jnp.where(keep, alpha * nll_sum, 0.0))
        den = jnp.sum(jnp.where(keep, alpha * counts, 0.0))
        return num / den


if __name__ == "__main__":
    key = jax.random.PRNGKey(0)
    k0, k1, k2, k3 = jax.random.split(key, 4)

    # Case 1: N not a multiple of the tile -> exercises multi-step accumulation,
    # the 2-way split axis and the in-kernel tail mask.
    N = 4000
    logits = jax.random.normal(k0, (N, NUM_CLASSES), dtype=jnp.float32)
    target = jax.random.randint(k1, (N,), 0, NUM_CLASSES, dtype=jnp.int32)
    loss_fn = ClassBalancedFocalLoss(beta=2.0, gamma=2.0, tile_n=512, num_splits=2,
                                     min_pallas_rows=1)
    loss = jax.block_until_ready(loss_fn(logits, target))
    ref = _reference_loss(logits, target, beta=2.0)
    assert bool(jnp.isfinite(loss)), loss
    assert jnp.allclose(loss, ref, rtol=3e-5, atol=3e-5), (loss, ref)

    # Case 2: odd tile count -> split 1 has a fully out-of-range (clamped) trailing
    # tile, exercising the clamp + all-false-mask path.
    N2 = 2500
    logits2 = jax.random.normal(k2, (N2, NUM_CLASSES), dtype=jnp.float32)
    target2 = jax.random.randint(k3, (N2,), 0, NUM_CLASSES, dtype=jnp.int32)
    loss_fn2 = ClassBalancedFocalLoss(beta=2.0, gamma=2.0, tile_n=512, num_splits=2,
                                      min_pallas_rows=1)
    loss2 = jax.block_until_ready(loss_fn2(logits2, target2))
    ref2 = _reference_loss(logits2, target2, beta=2.0)
    assert bool(jnp.isfinite(loss2)), loss2
    assert jnp.allclose(loss2, ref2, rtol=3e-5, atol=3e-5), (loss2, ref2)

    print("KERNEL_OK")
</pallas_src>

<mosaic_0001>
module attributes {stable_mosaic.version = 11 : i64} {
  func.func @_stats_kernel(%arg0: i32, %arg1: i32, %arg2: memref<5x512xf32, #tpu.memory_space<vmem>>, %arg3: memref<1x512xi32, #tpu.memory_space<vmem>>, %arg4: memref<1x5x1xf32, #tpu.memory_space<vmem>>, %arg5: memref<1x5x1xf32, #tpu.memory_space<vmem>>) attributes {dimension_semantics = [#tpu.dimension_semantics<parallel>, #tpu.dimension_semantics<arbitrary>], iteration_bounds = array<i64: 2, 4>, scalar_prefetch = 0 : i64, scratch_operands = 0 : i64, tpu.core_type = #tpu.core_type<tc>, window_params = [{transform_indices = @transform_0, window_bounds = array<i64: 5, 512>}, {transform_indices = @transform_1, window_bounds = array<i64: 1, 512>}, {transform_indices = @transform_2, window_bounds = array<i64: 1, 5, 1>}, {transform_indices = @transform_3, window_bounds = array<i64: 1, 5, 1>}]} {
    %c0_i32 = arith.constant 0 : i32
    %0 = arith.cmpi eq, %arg1, %c0_i32 : i32
    %1 = arith.extui %0 : i1 to i32
    %c0_i32_0 = arith.constant 0 : i32
    %2 = arith.cmpi ne, %1, %c0_i32_0 : i32
    scf.if %2 {
      %cst_21 = arith.constant 0.000000e+00 : f32
      %52 = vector.broadcast %cst_21 : f32 to vector<5x1xf32>
      %c0_22 = arith.constant 0 : index
      %c0_23 = arith.constant 0 : index
      %c0_24 = arith.constant 0 : index
      %53 = vector.load %arg4[%c0_22, %c0_23, %c0_24] : memref<1x5x1xf32, #tpu.memory_space<vmem>>, vector<1x5x1xf32>
      %54 = vector.shape_cast %53 : vector<1x5x1xf32> to vector<5x1xf32>
      %55 = vector.shape_cast %52 : vector<5x1xf32> to vector<1x5x1xf32>
      tpu.vector_store %arg4[%c0_22, %c0_23, %c0_24], %55 {strides = array<i32>} : memref<1x5x1xf32, #tpu.memory_space<vmem>>, vector<1x5x1xf32>,
      %cst_25 = arith.constant 0.000000e+00 : f32
      %56 = vector.broadcast %cst_25 : f32 to vector<5x1xf32>
      %c0_26 = arith.constant 0 : index
      %c0_27 = arith.constant 0 : index
      %c0_28 = arith.constant 0 : index
      %57 = vector.load %arg5[%c0_26, %c0_27, %c0_28] : memref<1x5x1xf32, #tpu.memory_space<vmem>>, vector<1x5x1xf32>
      %58 = vector.shape_cast %57 : vector<1x5x1xf32> to vector<5x1xf32>
      %59 = vector.shape_cast %56 : vector<5x1xf32> to vector<1x5x1xf32>
      tpu.vector_store %arg5[%c0_26, %c0_27, %c0_28], %59 {strides = array<i32>} : memref<1x5x1xf32, #tpu.memory_space<vmem>>, vector<1x5x1xf32>,
    } else {
    }
    %c4_i32 = arith.constant 4 : i32
    %3 = arith.muli %arg0, %c4_i32 : i32
    %4 = arith.addi %3, %arg1 : i32
    %c512_i32 = arith.constant 512 : i32
    %5 = arith.muli %4, %c512_i32 : i32
    %6 = tpu.iota {dimensions = array<i32: 1>} : vector<1x512xi32>
    %c4000_i32 = arith.constant 4000 : i32
    %7 = arith.subi %c4000_i32, %5 : i32
    %8 = vector.broadcast %7 : i32 to vector<1x512xi32>
    %9 = arith.cmpi slt, %6, %8 : vector<1x512xi32>
    %c0 = arith.constant 0 : index
    %c0_1 = arith.constant 0 : index
    %10 = vector.load %arg2[%c0, %c0_1] : memref<5x512xf32, #tpu.memory_space<vmem>>, vector<5x512xf32>
    %cst = arith.constant 0.000000e+00 : f32
    %11 = vector.shape_cast %9 : vector<1x512xi1> to vector<1x512xi1>
    %12 = vector.broadcast %11 : vector<1x512xi1> to vector<5x512xi1>
    %13 = vector.broadcast %cst : f32 to vector<5x512xf32>
    %14 = arith.select %12, %10, %13 : vector<5x512xi1>, vector<5x512xf32>
    %c0_2 = arith.constant 0 : index
    %c0_3 = arith.constant 0 : index
    %15 = vector.load %arg3[%c0_2, %c0_3] : memref<1x512xi32, #tpu.memory_space<vmem>>, vector<1x512xi32>
    %16 = tpu.iota {dimensions = array<i32: 0>} : vector<5x512xi32>
    %17 = vector.broadcast %15 : vector<1x512xi32> to vector<5x512xi32>
    %18 = arith.cmpi eq, %16, %17 : vector<5x512xi32>
    %19 = vector.broadcast %9 : vector<1x512xi1> to vector<5x512xi1>
    %20 = arith.andi %18, %19 : vector<5x512xi1>
    %21 = arith.extui %20 : vector<5x512xi1> to vector<5x512xi32>
    %22 = arith.sitofp %21 : vector<5x512xi32> to vector<5x512xf32>
    %cst_4 = arith.constant dense<0xFF800000> : vector<512xf32>
    %23 = vector.multi_reduction <maximumf>, %14, %cst_4 [0] : vector<5x512xf32> to vector<512xf32>
    %24 = vector.shape_cast %23 : vector<512xf32> to vector<1x512xf32>
    %25 = vector.broadcast %24 : vector<1x512xf32> to vector<5x512xf32>
    %26 = arith.subf %14, %25 : vector<5x512xf32>
    %27 = math.exp %26 : vector<5x512xf32>
    %cst_5 = arith.constant dense<0.000000e+00> : vector<512xf32>
    %28 = vector.multi_reduction <add>, %27, %cst_5 [0] : vector<5x512xf32> to vector<512xf32>
    %29 = vector.shape_cast %28 : vector<512xf32> to vector<1x512xf32>
    %30 = math.log %29 : vector<1x512xf32>
    %31 = arith.addf %24, %30 : vector<1x512xf32>
    %32 = vector.broadcast %31 : vector<1x512xf32> to vector<5x512xf32>
    %33 = arith.subf %32, %14 : vector<5x512xf32>
    %c0_6 = arith.constant 0 : index
    %c0_7 = arith.constant 0 : index
    %c0_8 = arith.constant 0 : index
    %34 = vector.load %arg4[%c0_6, %c0_7, %c0_8] : memref<1x5x1xf32, #tpu.memory_space<vmem>>, vector<1x5x1xf32>
    %35 = vector.shape_cast %34 : vector<1x5x1xf32> to vector<5x1xf32>
    %cst_9 = arith.constant dense<0.000000e+00> : vector<5xf32>
    %36 = vector.multi_reduction <add>, %22, %cst_9 [1] : vector<5x512xf32> to vector<5xf32>
    %37 = vector.shape_cast %36 : vector<5xf32> to vector<5x1xf32>
    %38 = arith.addf %35, %37 : vector<5x1xf32>
    %c0_10 = arith.constant 0 : index
    %c0_11 = arith.constant 0 : index
    %c0_12 = arith.constant 0 : index
    %39 = vector.load %arg4[%c0_10, %c0_11, %c0_12] : memref<1x5x1xf32, #tpu.memory_space<vmem>>, vector<1x5x1xf32>
    %40 = vector.shape_cast %39 : vector<1x5x1xf32> to vector<5x1xf32>
    %41 = vector.shape_cast %38 : vector<5x1xf32> to vector<1x5x1xf32>
    tpu.vector_store %arg4[%c0_10, %c0_11, %c0_12], %41 {strides = array<i32>} : memref<1x5x1xf32, #tpu.memory_space<vmem>>, vector<1x5x1xf32>,
    %c0_13 = arith.constant 0 : index
    %c0_14 = arith.constant 0 : index
    %c0_15 = arith.constant 0 : index
    %42 = vector.load %arg5[%c0_13, %c0_14, %c0_15] : memref<1x5x1xf32, #tpu.memory_space<vmem>>, vector<1x5x1xf32>
    %43 = vector.shape_cast %42 : vector<1x5x1xf32> to vector<5x1xf32>
    %cst_16 = arith.constant 0.000000e+00 : f32
    %44 = vector.broadcast %cst_16 : f32 to vector<5x512xf32>
    %45 = arith.select %20, %33, %44 : vector<5x512xi1>, vector<5x512xf32>
    %cst_17 = arith.constant dense<0.000000e+00> : vector<5xf32>
    %46 = vector.multi_reduction <add>, %45, %cst_17 [1] : vector<5x512xf32> to vector<5xf32>
    %47 = vector.shape_cast %46 : vector<5xf32> to vector<5x1xf32>
    %48 = arith.addf %43, %47 : vector<5x1xf32>
    %c0_18 = arith.constant 0 : index
    %c0_19 = arith.constant 0 : index
    %c0_20 = arith.constant 0 : index
    %49 = vector.load %arg5[%c0_18, %c0_19, %c0_20] : memref<1x5x1xf32, #tpu.memory_space<vmem>>, vector<1x5x1xf32>
    %50 = vector.shape_cast %49 : vector<1x5x1xf32> to vector<5x1xf32>
    %51 = vector.shape_cast %48 : vector<5x1xf32> to vector<1x5x1xf32>
    tpu.vector_store %arg5[%c0_18, %c0_19, %c0_20], %51 {strides = array<i32>} : memref<1x5x1xf32, #tpu.memory_space<vmem>>, vector<1x5x1xf32>,
    return
  }
  func.func @transform_0(%arg0: i32, %arg1: i32) -> (i32, i32) {
    %c4_i32 = arith.constant 4 : i32
    %0 = arith.muli %arg0, %c4_i32 : i32
    %1 = arith.addi %0, %arg1 : i32
    %c7_i32 = arith.constant 7 : i32
    %2 = arith.minsi %1, %c7_i32 : i32
    %c0_i32 = arith.constant 0 : i32
    %c0_i32_0 = arith.constant 0 : i32
    return %c0_i32, %2 : i32, i32
  }
  func.func @transform_1(%arg0: i32, %arg1: i32) -> (i32, i32) {
    %c4_i32 = arith.constant 4 : i32
    %0 = arith.muli %arg0, %c4_i32 : i32
    %1 = arith.addi %0, %arg1 : i32
    %c7_i32 = arith.constant 7 : i32
    %2 = arith.minsi %1, %c7_i32 : i32
    %c0_i32 = arith.constant 0 : i32
    %c0_i32_0 = arith.constant 0 : i32
    return %c0_i32, %2 : i32, i32
  }
  func.func @transform_2(%arg0: i32, %arg1: i32) -> (i32, i32, i32) {
    %c0_i32 = arith.constant 0 : i32
    %c0_i32_0 = arith.constant 0 : i32
    %c0_i32_1 = arith.constant 0 : i32
    return %arg0, %c0_i32, %c0_i32_0 : i32, i32, i32
  }
  func.func @transform_3(%arg0: i32, %arg1: i32) -> (i32, i32, i32) {
    %c0_i32 = arith.constant 0 : i32
    %c0_i32_0 = arith.constant 0 : i32
    %c0_i32_1 = arith.constant 0 : i32
    return %arg0, %c0_i32, %c0_i32_0 : i32, i32, i32
  }
}

</mosaic_0001>

<llo_original>
// kernel: tpu_custom_call.1
$region0: #{tpu_custom_call.1}
  #allocation0 [shape = 'u32[]', space=smem, size = 0x4, offset = 0x4, fixed_abs, tag = 'smem constant byte address 0x4 - core index']
  #allocation1 [shape = 'u32[144,128]{1,0:T(1,128)}', space=vmem, size = 0x12000, scoped, tag = 'internal scratch']
  %s0 = inlined_call_operand.hbm [shape: f32[5,4096], index: 0, kind: input, shape index: {}]
  %s1 = inlined_call_operand.hbm [shape: s32[1,4096], index: 1, kind: input, shape index: {}]
  %s2 = inlined_call_operand.vmem [shape: f32[2,5,1], index: 2, kind: output, shape index: {0}]
  %s3 = inlined_call_operand.vmem [shape: f32[2,5,1], index: 3, kind: output, shape index: {1}]
  %4 = xla_tuple %s2, %s3
  %s5 = sld [smem:[#allocation0]]
  $region61: #{tpu_custom_call.1} parent=0
    _
  %s7 = ssub.s32 1, %s5
  %s8 = scalar_select 0, %s7, %s5
  $region1: #{tpu_custom_call.1} parent=0
    #allocation2 [shape = 'u8[32768]{0}', space=vmem, size = 0x8000, scoped, tag = 'input window, operand 0']
    #allocation3 [shape = 's32[2]{0}', space=sflag, size = 0x8, scoped, tag = 'scoped memory for tpu_custom_call.1']
    #allocation4 [shape = 'u8[4096]{0}', space=vmem, size = 0x1000, scoped, tag = 'input window, operand 1']
    #allocation5 [shape = 's32[2]{0}', space=sflag, size = 0x8, scoped, tag = 'scoped memory for tpu_custom_call.1']
    %9 = vsyncpa [#allocation3], 0
    %s10 = scalar_lea.sflag [#allocation3], 1
    %11 = vsyncpa %s10, 0
    %12 = vsyncpa [#allocation5], 0
    %s13 = scalar_lea.sflag [#allocation5], 1
    %14 = vsyncpa %s13, 0
    loop: start=0, step=1, limit=10
    $region2: #{tpu_custom_call.1} parent=1 // loop_pre_header
      _
    $region3: #{tpu_custom_call.1} parent=1 // loop_header
      %s16 = sphi 0, %s20
      %p17 = scmp.ge.s32.totalorder %s16, 10
      %s23 = sphi 0, %s35
      %s24 = sphi 0, %s31
      %s25 = sphi 0, %s23
      %s26 = sphi 0, %s24
      %s27 = sphi 0, %s25
      %s28 = sphi 0, %s26
      %s46 = sphi 0, %s48
      %s49 = sphi 0, %s46
      %s50 = sphi 0, %s49
      %s66 = sphi 0, %s50
      %s80 = sphi 0, %s82
      %s83 = sphi 0, %s80
      %s84 = sphi 0, %s83
      %s100 = sphi 0, %s84
      %s106 = sphi 0, %s108
      %s109 = sphi 0, %s106
      %s110 = sphi 0, %s109
      %s126 = sphi 0, %s110
      %s132 = sphi 0, %s134
      %s135 = sphi 0, %s132
      %s136 = sphi 0, %s135
      %s152 = sphi 0, %s136
    $region4: #{tpu_custom_call.1} parent=1 // loop_header_branch
      %19 = sbr.rel (%p17) target = $region8
    $region5: #{tpu_custom_call.1} parent=1 // loop_body
      %s21 = ssub.s32 %s16, 1
      %s22 = ssub.s32 %s16, 2
      %s29 = sadd.s32 1, %s24
      %p30 = scmp.ge.s32.totalorder %s29, 4
      %s31 = scalar_select %p30, 0, %s29
      %s32 = sadd.s32 1, %s23
      %s33 = scalar_select %p30, %s32, %s23
      %p34 = scmp.ge.s32.totalorder %s33, 2
      %s35 = scalar_select %p34, 0, %s33
      %s36 = smul.u32 %s23, 4
      %s37 = sadd.s32 %s36, %s24
      %p38 = scmp.lt.s32.totalorder %s37, 7
      %s39 = scalar_select %p38, %s37, 7
      %s40 = smul.u32 %s35, 4
      %s41 = sadd.s32 %s40, %s31
      %p42 = scmp.lt.s32.totalorder %s41, 7
      %s43 = scalar_select %p42, %s41, 7
      %s44 = ssub.s32 %s39, %s43
      %p45 = scmp.eq.s32.totalorder %s44, 0
      %s47 = sadd.s32 %s46, 1
      %s48 = scalar_select %p45, %s46, %s47
      %p51 = pneg %p45
      %p52 = scmp.eq.s32.totalorder %s16, 7
      %p53 = por %p51, %p52
      %p54 = scmp.ne.s32.totalorder %s46, %s49
      %p55 = scmp.eq.s32.totalorder %s16, 0
      %p56 = por %p54, %p55
      %p57 = scmp.ne.s32.totalorder %s46, %s49
      %p58 = scmp.eq.s32.totalorder %s21, 7
      %p59 = por %p57, %p58
      %p60 = scmp.ne.s32.totalorder %s49, %s50
      %p61 = scmp.eq.s32.totalorder %s21, 0
      %p62 = por %p60, %p61
      %p63 = scmp.ne.s32.totalorder %s49, %s50
      %p64 = scmp.eq.s32.totalorder %s22, 7
      %p65 = por %p63, %p64
      %p67 = scmp.ne.s32.totalorder %s50, %s66
      %p68 = scmp.eq.s32.totalorder %s22, 0
      %p69 = por %p67, %p68
      %s70 = smul.u32 %s23, 4
      %s71 = sadd.s32 %s70, %s24
      %p72 = scmp.lt.s32.totalorder %s71, 7
      %s73 = scalar_select %p72, %s71, 7
      %s74 = smul.u32 %s35, 4
      %s75 = sadd.s32 %s74, %s31
      %p76 = scmp.lt.s32.totalorder %s75, 7
      %s77 = scalar_select %p76, %s75, 7
      %s78 = ssub.s32 %s73, %s77
      %p79 = scmp.eq.s32.totalorder %s78, 0
      %s81 = sadd.s32 %s80, 1
      %s82 = scalar_select %p79, %s80, %s81
      %p85 = pneg %p79
      %p86 = scmp.eq.s32.totalorder %s16, 7
      %p87 = por %p85, %p86
      %p88 = scmp.ne.s32.totalorder %s80, %s83
      %p89 = scmp.eq.s32.totalorder %s16, 0
      %p90 = por %p88, %p89
      %p91 = scmp.ne.s32.totalorder %s80, %s83
      %p92 = scmp.eq.s32.totalorder %s21, 7
      %p93 = por %p91, %p92
      %p94 = scmp.ne.s32.totalorder %s83, %s84
      %p95 = scmp.eq.s32.totalorder %s21, 0
      %p96 = por %p94, %p95
      %p97 = scmp.ne.s32.totalorder %s83, %s84
      %p98 = scmp.eq.s32.totalorder %s22, 7
      %p99 = por %p97, %p98
      %p101 = scmp.ne.s32.totalorder %s84, %s100
      %p102 = scmp.eq.s32.totalorder %s22, 0
      %p103 = por %p101, %p102
      %s104 = ssub.s32 %s23, %s35
      %p105 = scmp.eq.s32.totalorder %s104, 0
      %s107 = sadd.s32 %s106, 1
      %s108 = scalar_select %p105, %s106, %s107
      %p111 = pneg %p105
      %p112 = scmp.eq.s32.totalorder %s16, 7
      %p113 = por %p111, %p112
      %p114 = scmp.ne.s32.totalorder %s106, %s109
      %p115 = scmp.eq.s32.totalorder %s16, 0
      %p116 = por %p114, %p115
      %p117 = scmp.ne.s32.totalorder %s106, %s109
      %p118 = scmp.eq.s32.totalorder %s21, 7
      %p119 = por %p117, %p118
      %p120 = scmp.ne.s32.totalorder %s109, %s110
      %p121 = scmp.eq.s32.totalorder %s21, 0
      %p122 = por %p120, %p121
      %p123 = scmp.ne.s32.totalorder %s109, %s110
      %p124 = scmp.eq.s32.totalorder %s22, 7
      %p125 = por %p123, %p124
      %p127 = scmp.ne.s32.totalorder %s110, %s126
      %p128 = scmp.eq.s32.totalorder %s22, 0
      %p129 = por %p127, %p128
      %s130 = ssub.s32 %s23, %s35
      %p131 = scmp.eq.s32.totalorder %s130, 0
      %s133 = sadd.s32 %s132, 1
      %s134 = scalar_select %p131, %s132, %s133
      %p137 = pneg %p131
      %p138 = scmp.eq.s32.totalorder %s16, 7
      %p139 = por %p137, %p138
      %p140 = scmp.ne.s32.totalorder %s132, %s135
      %p141 = scmp.eq.s32.totalorder %s16, 0
      %p142 = por %p140, %p141
      %p143 = scmp.ne.s32.totalorder %s132, %s135
      %p144 = scmp.eq.s32.totalorder %s21, 7
      %p145 = por %p143, %p144
      %p146 = scmp.ne.s32.totalorder %s135, %s136
      %p147 = scmp.eq.s32.totalorder %s21, 0
      %p148 = por %p146, %p147
      %p149 = scmp.ne.s32.totalorder %s135, %s136
      %p150 = scmp.eq.s32.totalorder %s22, 7
      %p151 = por %p149, %p150
      %p153 = scmp.ne.s32.totalorder %s136, %s152
      %p154 = scmp.eq.s32.totalorder %s22, 0
      %p155 = por %p153, %p154
      %p156 = scmp.le.s32.totalorder 1, %s16
      %p157 = scmp.lt.s32.totalorder %s16, 9
      %p158 = pnand %p156, %p157
      %p159 = pneg %p158
      // Predicated region
      $region9: #{tpu_custom_call.1} parent=5 // pred_check
        _
      $region10: #{tpu_custom_call.1} parent=5 // pred_check_branch
        %161 = sbr.rel (%p158) target = $region12
      $region11: #{tpu_custom_call.1} parent=5 // pred_region
        %s162 = ssub.s32 %s16, 1
      $region12: #{tpu_custom_call.1} parent=5 // pred_fallthru
        _
      %p163 = scmp.lt.s32.totalorder %s16, 8
      // Predicated region
      $region13: #{tpu_custom_call.1} parent=5 // pred_check
        %p164 = pneg %p163
      $region14: #{tpu_custom_call.1} parent=5 // pred_check_branch
        %166 = sbr.rel (%p164) target = $region16
      $region15: #{tpu_custom_call.1} parent=5 // pred_region
        // Predicated region
        $region17: #{tpu_custom_call.1} parent=15 // pred_check
          %p167 = pneg %p56
        $region18: #{tpu_custom_call.1} parent=15 // pred_check_branch
          %169 = sbr.rel (%p167) target = $region20
        $region19: #{tpu_custom_call.1} parent=15 // pred_region
          %s170 = sand.u32 %s46, 1
          %s171 = scalar_lea.sflag [#allocation3], %s170
          %s172 = sand.u32 %s46, 1
          %s173 = smul.addr %s172, 32
          %s174 = scalar_lea.vmem [#allocation2], %s173
          %s175 = smul.u32 %s23, 4
          %s176 = sadd.s32 %s175, %s24
          %p177 = scmp.lt.s32.totalorder %s176, 7
          %s178 = scalar_select %p177, %s176, 7
          %s179 = smul.u32 4, %s178
          %s181 = ssub.s32 512, 512
          %182 = vsyncadd %s171, %s181
          %s183 = smul.addr %s179, 128
          %s184 = scalar_lea.hbm %s0, %s183
          %s186 = sshll.u32 %s174, 4
          %s187 = int_to_ptr.vmem [resolvable:$true] %s186
          %189 = dma.hbm_to_vmem [thread:$0]  %s184, 512, %s187, %s171
        $region20: #{tpu_custom_call.1} parent=15 // pred_fallthru
          _
        // Predicated region
        $region21: #{tpu_custom_call.1} parent=15 // pred_check
          %p190 = pneg %p90
        $region22: #{tpu_custom_call.1} parent=15 // pred_check_branch
          %192 = sbr.rel (%p190) target = $region24
        $region23: #{tpu_custom_call.1} parent=15 // pred_region
          %s193 = sand.u32 %s80, 1
          %s194 = scalar_lea.sflag [#allocation5], %s193
          %s195 = sand.u32 %s80, 1
          %s196 = smul.addr %s195, 4
          %s197 = scalar_lea.vmem [#allocation4], %s196
          %s198 = smul.u32 %s23, 4
          %s199 = sadd.s32 %s198, %s24
          %p200 = scmp.lt.s32.totalorder %s199, 7
          %s201 = scalar_select %p200, %s199, 7
          %s202 = smul.u32 4, %s201
          %s204 = ssub.s32 64, 64
          %205 = vsyncadd %s194, %s204
          %s206 = smul.addr %s202, 16
          %s207 = scalar_lea.hbm %s1, %s206
          %s209 = sshll.u32 %s197, 4
          %s210 = int_to_ptr.vmem [resolvable:$true] %s209
          %212 = dma.hbm_to_vmem [thread:$0]  %s207, 64, %s210, %s194
        $region24: #{tpu_custom_call.1} parent=15 // pred_fallthru
          _
      $region16: #{tpu_custom_call.1} parent=5 // pred_fallthru
        _
      %p213 = scmp.le.s32.totalorder 1, %s16
      %p214 = scmp.lt.s32.totalorder %s16, 9
      %p215 = pnand %p213, %p214
      %p216 = pneg %p215
      // Predicated region
      $region25: #{tpu_custom_call.1} parent=5 // pred_check
        _
      $region26: #{tpu_custom_call.1} parent=5 // pred_check_branch
        %218 = sbr.rel (%p215) target = $region28
      $region27: #{tpu_custom_call.1} parent=5 // pred_region
        %s219 = ssub.s32 %s16, 1
        %s220 = sand.u32 %s49, 1
        %s221 = scalar_lea.sflag [#allocation3], %s220
        %s222 = sand.u32 %s49, 1
        %s223 = smul.addr %s222, 32
        %s224 = scalar_lea.vmem [#allocation2], %s223
        // Predicated region
        $region29: #{tpu_custom_call.1} parent=27 // pred_check
          %p225 = pneg %p62
        $region30: #{tpu_custom_call.1} parent=27 // pred_check_branch
          %227 = sbr.rel (%p225) target = $region32
        $region31: #{tpu_custom_call.1} parent=27 // pred_region
          %228 = dma.done %s221, 512
        $region32: #{tpu_custom_call.1} parent=27 // pred_fallthru
          _
        %s229 = sand.u32 %s83, 1
        %s230 = scalar_lea.sflag [#allocation5], %s229
        %s231 = sand.u32 %s83, 1
        %s232 = smul.addr %s231, 4
        %s233 = scalar_lea.vmem [#allocation4], %s232
        // Predicated region
        $region33: #{tpu_custom_call.1} parent=27 // pred_check
          %p234 = pneg %p96
        $region34: #{tpu_custom_call.1} parent=27 // pred_check_branch
          %236 = sbr.rel (%p234) target = $region36
        $region35: #{tpu_custom_call.1} parent=27 // pred_region
          %237 = dma.done %s230, 64
        $region36: #{tpu_custom_call.1} parent=27 // pred_fallthru
          _
        %s238 = sand.u32 %s49, 1
        %s239 = scalar_lea.sflag [#allocation3], %s238
        %s240 = sand.u32 %s49, 1
        %s241 = smul.addr %s240, 32
        %s242 = scalar_lea.vmem [#allocation2], %s241
        %p243 = pneg %p62
        %p244 = pneg %p59
        %s245 = sand.u32 %s83, 1
        %s246 = scalar_lea.sflag [#allocation5], %s245
        %s247 = sand.u32 %s83, 1
        %s248 = smul.addr %s247, 4
        %s249 = scalar_lea.vmem [#allocation4], %s248
        %p250 = pneg %p96
        %p251 = pneg %p93
        %p252 = pneg %p122
        %p253 = pneg %p119
        %p254 = scmp.lt.s32.totalorder %s25, 1
        %s255 = scalar_select %p254, %s25, 1
        %s256 = smul.addr %s255, 8
        %s257 = scalar_lea.vmem %s2, %s256
        %p258 = pneg %p148
        %p259 = pneg %p145
        %p260 = scmp.lt.s32.totalorder %s25, 1
        %s261 = scalar_select %p260, %s25, 1
        %s262 = smul.addr %s261, 8
        %s263 = scalar_lea.vmem %s3, %s262
        %s264 = smul.u32 %s25, 4
        %s265 = sadd.s32 %s264, %s26
        %p266 = scmp.lt.s32.totalorder %s265, 7
        %s267 = scalar_select %p266, %s265, 7
        %s268 = smul.u32 4, %s267
        %s269 = smul.u32 %s25, 4
        %s270 = sadd.s32 %s269, %s26
        %p271 = scmp.lt.s32.totalorder %s270, 7
        %s272 = scalar_select %p271, %s270, 7
        %s273 = smul.u32 4, %s272
        %p274 = scmp.lt.s32.totalorder %s25, 1
        %s275 = scalar_select %p274, %s25, 1
        %s276 = smul.addr %s275, 8
        %s277 = scalar_lea.vmem %s2, %s276
        %p278 = scmp.lt.s32.totalorder %s25, 1
        %s279 = scalar_select %p278, %s25, 1
        %s280 = smul.addr %s279, 8
        %s281 = scalar_lea.vmem %s3, %s280
        %p282 = scmp.eq.s32.totalorder %s26, 0
        // Predicated region
        $region37: #{tpu_custom_call.1} parent=27 // pred_check
          %p283 = pneg %p282
        $region38: #{tpu_custom_call.1} parent=27 // pred_check_branch
          %285 = sbr.rel (%p283) target = $region40
        $region39: #{tpu_custom_call.1} parent=27 // pred_region
          %vm286 = vcmask 4096
          %287 = vst.msk [vmem:[%s277] sm:$0x1f] %vm286, 0.0
          %288 = vst.msk [vmem:[%s281] sm:$0x1f] %vm286, 0.0
        $region40: #{tpu_custom_call.1} parent=27 // pred_fallthru
          _
        %s289 = smul.u32 %s25, 4
        %s290 = sadd.s32 %s289, %s26
        %s291 = smul.u32 %s290, 512
        %v292 = vlaneseq
        %v293 = vand.u32 %v292, 127
        %v294 = vadd.s32 %v293, 128
        %v295 = vadd.s32 %v293, 256
        %v296 = vadd.s32 %v293, 384
        %s297 = ssub.s32 4000, %s291
        %v298 = vstv %s297
        %vm299 = vcmp.lt.s32.totalorder %v293, %v298
        %vm300 = vcmp.lt.s32.totalorder %v294, %v298
        %vm301 = vcmp.lt.s32.totalorder %v295, %v298
        %vm302 = vcmp.lt.s32.totalorder %v296, %v298
        %v303 = vld [vmem:[%s224] sm:$0x1f]
        %v304 = vld [vmem:[%s224 + $0x8] sm:$0x1f]
        %v305 = vld [vmem:[%s224 + $0x10] sm:$0x1f]
        %v306 = vld [vmem:[%s224 + $0x18] sm:$0x1f]
        %v307 = vsel %vm299, 1, 0
        %v308 = vsel %vm300, 1, 0
        %v309 = vsel %vm301, 1, 0
        %v310 = vsel %vm302, 1, 0
        %vm311 = vcmp.eq.s32.totalorder %v307, 1
        %vm312 = vcmp.eq.s32.totalorder %v308, 1
        %vm313 = vcmp.eq.s32.totalorder %v309, 1
        %vm314 = vcmp.eq.s32.totalorder %v310, 1
        %v315 = vsel %vm311, %v303, 0.0
        %v316 = vsel %vm312, %v304, 0.0
        %v317 = vsel %vm313, %v305, 0.0
        %v318 = vsel %vm314, %v306, 0.0
        %v319 = vld [vmem:[%s233] sm:$0xf]
        %v320 = vlaneseq
        %v321 = vshrl.u32 %v320, 7
        %v322 = vlaneseq
        %v323 = vshrl.u32 %v322, 7
        %v324 = vsub.s32 0, %v323
        %v325 = vrot.slane %v319, %v324
        %v326 = vlaneseq
        %v327 = vshrl.u32 %v326, 7
        %v328 = vsub.s32 1, %v327
        %v329 = vrot.slane %v319, %v328
        %v330 = vlaneseq
        %v331 = vshrl.u32 %v330, 7
        %v332 = vsub.s32 2, %v331
        %v333 = vrot.slane %v319, %v332
        %v334 = vlaneseq
        %v335 = vshrl.u32 %v334, 7
        %v336 = vsub.s32 3, %v335
        %v337 = vrot.slane %v319, %v336
        %vm338 = vcmp.eq.s32.totalorder %v321, %v325
        %vm339 = vcmp.eq.s32.totalorder %v321, %v329
        %vm340 = vcmp.eq.s32.totalorder %v321, %v333
        %vm341 = vcmp.eq.s32.totalorder %v321, %v337
        %vm342 = vmand %vm338, %vm311
        %vm343 = vmand %vm339, %vm312
        %vm344 = vmand %vm340, %vm313
        %vm345 = vmand %vm341, %vm314
        %v346 = vsel %vm342, 1, 0
        %v347 = vsel %vm343, 1, 0
        %v348 = vsel %vm344, 1, 0
        %v349 = vsel %vm345, 1, 0
        %v350 = vcvt.s32.f32 %v346
        %v351 = vcvt.s32.f32 %v347
        %v352 = vcvt.s32.f32 %v348
        %v353 = vcvt.s32.f32 %v349
        %vm354 = vcmask 1044480
        %v355 = vsel %vm354, %v315, -inf
        %v356 = vrot.slane %v355, 4
        %v357 = vmax.f32 %v355, %v356
        %v358 = vrot.slane %v357, 2
        %v359 = vmax.f32 %v357, %v358
        %v360 = vrot.slane %v359, 1
        %v361 = vmax.f32 %v359, %v360
        %v362 = vsel %vm354, %v316, -inf
        %v363 = vrot.slane %v362, 4
        %v364 = vmax.f32 %v362, %v363
        %v365 = vrot.slane %v364, 2
        %v366 = vmax.f32 %v364, %v365
        %v367 = vrot.slane %v366, 1
        %v368 = vmax.f32 %v366, %v367
        %v369 = vsel %vm354, %v317, -inf
        %v370 = vrot.slane %v369, 4
        %v371 = vmax.f32 %v369, %v370
        %v372 = vrot.slane %v371, 2
        %v373 = vmax.f32 %v371, %v372
        %v374 = vrot.slane %v373, 1
        %v375 = vmax.f32 %v373, %v374
        %v376 = vsel %vm354, %v318, -inf
        %v377 = vrot.slane %v376, 4
        %v378 = vmax.f32 %v376, %v377
        %v379 = vrot.slane %v378, 2
        %v380 = vmax.f32 %v378, %v379
        %v381 = vrot.slane %v380, 1
        %v382 = vmax.f32 %v380, %v381
        %v383 = vsub.f32 %v315, %v361
        %v384 = vsub.f32 %v316, %v368
        %v385 = vsub.f32 %v317, %v375
        %v386 = vsub.f32 %v318, %v382
        %v387 = vmul.f32 %v383, 1.442695
        %v388 = vpow.pop %v387
        %v389 = vmul.f32 %v384, 1.442695
        %v390 = vpow.pop %v389
        %v391 = vmul.f32 %v385, 1.442695
        %v392 = vpow.pop %v391
        %v393 = vmul.f32 %v386, 1.442695
        %v394 = vpow.pop %v393
        %v395 = vsel %vm354, %v388, 0.0
        %v396 = vrot.slane %v395, 4
        %v397 = vadd.f32 %v395, %v396
        %v398 = vrot.slane %v397, 2
        %v399 = vadd.f32 %v397, %v398
        %v400 = vrot.slane %v399, 1
        %v401 = vadd.f32 %v399, %v400
        %v402 = vsel %vm354, %v390, 0.0
        %v403 = vrot.slane %v402, 4
        %v404 = vadd.f32 %v402, %v403
        %v405 = vrot.slane %v404, 2
        %v406 = vadd.f32 %v404, %v405
        %v407 = vrot.slane %v406, 1
        %v408 = vadd.f32 %v406, %v407
        %v409 = vsel %vm354, %v392, 0.0
        %v410 = vrot.slane %v409, 4
        %v411 = vadd.f32 %v409, %v410
        %v412 = vrot.slane %v411, 2
        %v413 = vadd.f32 %v411, %v412
        %v414 = vrot.slane %v413, 1
        %v415 = vadd.f32 %v413, %v414
        %v416 = vsel %vm354, %v394, 0.0
        %v417 = vrot.slane %v416, 4
        %v418 = vadd.f32 %v416, %v417
        %v419 = vrot.slane %v418, 2
        %v420 = vadd.f32 %v418, %v419
        %v421 = vrot.slane %v420, 1
        %v422 = vadd.f32 %v420, %v421
        %v423 = vlog2.pop %v401
        %v424 = vmul.f32 %v423, 0.6931472
        %v425 = vlog2.pop %v408
        %v426 = vmul.f32 %v425, 0.6931472
        %v427 = vlog2.pop %v415
        %v428 = vmul.f32 %v427, 0.6931472
        %v429 = vlog2.pop %v422
        %v430 = vmul.f32 %v429, 0.6931472
        %v431 = vadd.f32 %v361, %v424
        %v432 = vadd.f32 %v368, %v426
        %v433 = vadd.f32 %v375, %v428
        %v434 = vadd.f32 %v382, %v430
        %v435 = vsub.f32 %v431, %v315
        %v436 = vsub.f32 %v432, %v316
        %v437 = vsub.f32 %v433, %v317
        %v438 = vsub.f32 %v434, %v318
        %v439 = vld [vmem:[%s277] sm:$0x1f]
        %v440 = vsel %vm354, %v350, 0.0
        %v441 = vsel %vm354, %v351, 0.0
        %v442 = vadd.f32 %v440, %v441
        %v443 = vsel %vm354, %v352, 0.0
        %v444 = vadd.f32 %v442, %v443
        %v445 = vsel %vm354, %v353, 0.0
        %v446 = vadd.f32 %v444, %v445
        %447 = vadd.xlane.f32.xlu0 %v446
        %v448 = vpop.xlane.xlu0 %447
        %v449 = vadd.f32 %v439, %v448
        %vm450 = vcmask 4096
        %451 = vst.msk [vmem:[%s277] sm:$0x1f] %vm450, %v449
        %v452 = vld [vmem:[%s281] sm:$0x1f]
        %v453 = vsel %vm342, %v435, 0.0
        %v454 = vsel %vm343, %v436, 0.0
        %v455 = vsel %vm344, %v437, 0.0
        %v456 = vsel %vm345, %v438, 0.0
        %v457 = vsel %vm354, %v453, 0.0
        %v458 = vsel %vm354, %v454, 0.0
        %v459 = vadd.f32 %v457, %v458
        %v460 = vsel %vm354, %v455, 0.0
        %v461 = vadd.f32 %v459, %v460
        %v462 = vsel %vm354, %v456, 0.0
        %v463 = vadd.f32 %v461, %v462
        %464 = vadd.xlane.f32.xlu0 %v463
        %v465 = vpop.xlane.xlu0 %464
        %v466 = vadd.f32 %v452, %v465
        %467 = vst.msk [vmem:[%s281] sm:$0x1f] %vm450, %v466
        %p468 = scmp.lt.s32.totalorder %s25, 1
        %s469 = scalar_select %p468, %s25, 1
        %s470 = smul.addr %s469, 8
        %s471 = scalar_lea.vmem %s2, %s470
        %p472 = scmp.lt.s32.totalorder %s25, 1
        %s473 = scalar_select %p472, %s25, 1
        %s474 = smul.addr %s473, 8
        %s475 = scalar_lea.vmem %s3, %s474
        // Predicated region
        $region41: #{tpu_custom_call.1} parent=27 // pred_check
          %p476 = pneg %p119
        $region42: #{tpu_custom_call.1} parent=27 // pred_check_branch
          %478 = sbr.rel (%p476) target = $region44
        $region43: #{tpu_custom_call.1} parent=27 // pred_region
          _
        $region44: #{tpu_custom_call.1} parent=27 // pred_fallthru
          _
        // Predicated region
        $region45: #{tpu_custom_call.1} parent=27 // pred_check
          %p479 = pneg %p145
        $region46: #{tpu_custom_call.1} parent=27 // pred_check_branch
          %481 = sbr.rel (%p479) target = $region48
        $region47: #{tpu_custom_call.1} parent=27 // pred_region
          _
        $region48: #{tpu_custom_call.1} parent=27 // pred_fallthru
          _
      $region28: #{tpu_custom_call.1} parent=5 // pred_fallthru
        _
      %p482 = scmp.le.s32.totalorder 2, %s16
      // Predicated region
      $region49: #{tpu_custom_call.1} parent=5 // pred_check
        %p483 = pneg %p482
      $region50: #{tpu_custom_call.1} parent=5 // pred_check_branch
        %485 = sbr.rel (%p483) target = $region52
      $region51: #{tpu_custom_call.1} parent=5 // pred_region
        %s486 = ssub.s32 %s16, 2
        // Predicated region
        $region53: #{tpu_custom_call.1} parent=51 // pred_check
          %p487 = pneg %p125
        $region54: #{tpu_custom_call.1} parent=51 // pred_check_branch
          %489 = sbr.rel (%p487) target = $region56
        $region55: #{tpu_custom_call.1} parent=51 // pred_region
          %p490 = scmp.lt.s32.totalorder %s27, 1
          %s491 = scalar_select %p490, %s27, 1
          %s492 = smul.addr %s491, 8
          %s493 = scalar_lea.vmem %s2, %s492
        $region56: #{tpu_custom_call.1} parent=51 // pred_fallthru
          _
        // Predicated region
        $region57: #{tpu_custom_call.1} parent=51 // pred_check
          %p494 = pneg %p151
        $region58: #{tpu_custom_call.1} parent=51 // pred_check_branch
          %496 = sbr.rel (%p494) target = $region60
        $region59: #{tpu_custom_call.1} parent=51 // pred_region
          %p497 = scmp.lt.s32.totalorder %s27, 1
          %s498 = scalar_select %p497, %s27, 1
          %s499 = smul.addr %s498, 8
          %s500 = scalar_lea.vmem %s3, %s499
        $region60: #{tpu_custom_call.1} parent=51 // pred_fallthru
          _
      $region52: #{tpu_custom_call.1} parent=5 // pred_fallthru
        _
    $region6: #{tpu_custom_call.1} parent=1 // loop_footer
      %s20 = sadd.s32 1, %s16
    $region7: #{tpu_custom_call.1} parent=1 // loop_footer_branch
      %15 = sbr.rel target = $region3
    $region8: #{tpu_custom_call.1} parent=1 // loop_exit
      _
    %501 = vsyncpa [#allocation3], 1
    %s502 = scalar_lea.sflag [#allocation3], 1
    %503 = vsyncpa %s502, 1
    %504 = vsyncpa [#allocation5], 1
    %s505 = scalar_lea.sflag [#allocation5], 1
    %506 = vsyncpa %s505, 1

</llo_original>
